<compile_context>
chip_gen: v7x
topology: tpu7x:2x2x1
jax: 0.10.0
libtpu: 0.0.40
codegen_flags: <defaults>
</compile_context>

<pallas_src>
import numpy as np
import jax
import jax.numpy as jnp
from jax import lax
from jax.experimental import pallas as pl
from jax.experimental.pallas import tpu as pltpu

BN_EPS = 1e-5
LANE = 128
SUBLANE = 8


def _round_up(v, m):
    return (v + m - 1) // m * m


def gine_kernel(ts_ref, cnt_ref,                       # scalar-prefetch (SMEM)
                xsrc_ref, ea_ref, dst_ref, x_ref, eps_ref,
                w1_ref, b1_ref, w2_ref, b2_ref,
                o_ref, acc_ref):
    i = pl.program_id(0)            # node tile   (parallel / megacore-shardable)
    e = pl.program_id(1)            # edge-tile step within this node tile's bucket
    tn = o_ref.shape[0]
    te = ea_ref.shape[0]
    cdt = w1_ref.dtype              # MLP MXU dtype (bf16 or f32)

    @pl.when(e == 0)
    def _init():
        acc_ref[...] = jnp.zeros_like(acc_ref)

    # Scatter-add only for edge tiles that actually belong to this node tile's bucket.
    @pl.when(e < cnt_ref[i])
    def _scatter():
        # msg = ReLU(x[src] + edge_attr), f32 (x[src] pre-gathered in the wrapper)
        msg = jnp.maximum(xsrc_ref[...] + ea_ref[...], 0.0)                  # (te, F)
        # (tn, te) one-hot of dst ids local to this node tile; padded / out-of-tile
        # dsts match nothing. Plain (M,K)x(K,N) MXU matmul, exact in f32.
        node_ids = lax.broadcasted_iota(jnp.int32, (tn, te), 0) + i * tn
        sct = (node_ids == dst_ref[...]).astype(jnp.float32)                 # (tn, te)
        acc_ref[...] += jnp.dot(sct, msg, preferred_element_type=jnp.float32)

    # Finalize: (1+eps)*x + aggr, then fused MLP (BN folded into w1/b1).
    @pl.when(e == pl.num_programs(1) - 1)
    def _finalize():
        eps = eps_ref[0, 0]
        h = (1.0 + eps) * x_ref[...] + acc_ref[...]                          # (tn, F) f32
        h1 = jnp.dot(h.astype(cdt), w1_ref[...],
                     preferred_element_type=jnp.float32) + b1_ref[...]
        h1 = jnp.maximum(h1, 0.0)
        out = jnp.dot(h1.astype(cdt), w2_ref[...],
                      preferred_element_type=jnp.float32) + b2_ref[...]
        o_ref[...] = out.astype(o_ref.dtype)


def gine_conv(x, edge_index, edge_attr, params, *,
              tn=None, te=None, compute_dtype=jnp.bfloat16):
    """x: (N, nin) f32; edge_index: (2, E) i32; edge_attr: (E, nin) f32."""
    n, nin = x.shape
    nedge = int(edge_index.shape[1])
    nhid = params["w1"].shape[1]
    nout = params["w2"].shape[1]

    # lane-dense feature padding
    f_in = _round_up(nin, LANE)
    f_hid = _round_up(nhid, LANE)
    f_out = _round_up(nout, LANE)

    if tn is None:
        tn = min(128, _round_up(n, SUBLANE))
    if te is None:
        te = min(512, _round_up(max(nedge, 1), LANE))
    # te must be lane-dense (dst travels as a (1, te) block)
    te = _round_up(te, LANE)
    n_pad = _round_up(n, tn)
    e_pad = _round_up(max(nedge, 1), te)
    n_node_tiles = n_pad // tn
    n_edge_tiles = e_pad // te

    # ---- host-side edge bucketing: sort by dst, per-node-tile edge-tile ranges ----
    dst_np = np.asarray(jax.device_get(edge_index[1]), dtype=np.int64)
    order_np = np.argsort(dst_np, kind="stable")
    dst_sorted_np = dst_np[order_np]
    bounds = np.arange(n_node_tiles + 1, dtype=np.int64) * tn
    lo = np.searchsorted(dst_sorted_np, bounds[:-1], side="left")
    hi = np.searchsorted(dst_sorted_np, bounds[1:], side="left")
    ts_raw = lo // te
    tend = np.where(hi > lo, -(-hi // te), ts_raw)                 # ceil(hi/te) when non-empty
    tile_count_np = (tend - ts_raw).astype(np.int32)
    tile_start_np = np.minimum(ts_raw, n_edge_tiles - 1).astype(np.int32)
    max_count = int(max(int(tile_count_np.max()), 1)) if tile_count_np.size else 1

    # ---- device-side prep: sort edges, pre-gather x[src], pad lane-dense ----
    order = jnp.asarray(order_np, dtype=jnp.int32)
    src_sorted = jnp.asarray(edge_index[0], jnp.int32)[order]
    dst_sorted = jnp.asarray(edge_index[1], jnp.int32)[order]
    x_f32 = x.astype(jnp.float32)
    x_src = jnp.take(x_f32, src_sorted, axis=0)                    # (E, nin) pre-gathered
    ea_sorted = edge_attr.astype(jnp.float32)[order]

    def pad2(a, r, c):
        return jnp.pad(a, ((0, r - a.shape[0]), (0, c - a.shape[1])))

    xsrc_p = pad2(x_src, e_pad, f_in)
    ea_p = pad2(ea_sorted, e_pad, f_in)
    # padded edges get dst = -1 -> match no node row -> zero contribution
    dst_p = jnp.pad(dst_sorted, (0, e_pad - nedge),
                    constant_values=-1).reshape(1, e_pad)
    x_p = pad2(x_f32, n_pad, f_in)

    # fold eval-mode BatchNorm into Linear1 (one-time host-side fold)
    inv_std = lax.rsqrt(params["bn_var"].astype(jnp.float32) + BN_EPS)
    scale = params["bn_gamma"].astype(jnp.float32) * inv_std
    w1f = params["w1"].astype(jnp.float32) * scale[None, :]
    b1f = params["bn_beta"].astype(jnp.float32) - params["bn_mean"].astype(jnp.float32) * scale

    w1_p = pad2(w1f, f_in, f_hid).astype(compute_dtype)
    b1_p = pad2(b1f.reshape(1, -1), 1, f_hid)                      # stays f32
    w2_p = pad2(params["w2"].astype(jnp.float32), f_hid, f_out).astype(compute_dtype)
    b2_p = pad2(params["b2"].astype(jnp.float32).reshape(1, -1), 1, f_out)
    eps = jnp.reshape(params["eps"].astype(jnp.float32), (1, 1))

    ts_arr = jnp.asarray(tile_start_np, jnp.int32)
    cnt_arr = jnp.asarray(tile_count_np, jnp.int32)

    grid = (n_node_tiles, max_count)

    # data-dependent edge-tile index: node tile i streams tiles [ts[i], ts[i]+cnt[i]);
    # steps beyond cnt[i] re-point at the last valid tile and are skipped in-kernel.
    def edge_tile(i, e, ts, cnt):
        return ts[i] + jnp.minimum(e, jnp.maximum(cnt[i] - 1, 0))

    in_specs = [
        pl.BlockSpec((te, f_in), lambda i, e, ts, cnt: (edge_tile(i, e, ts, cnt), 0)),  # x[src]
        pl.BlockSpec((te, f_in), lambda i, e, ts, cnt: (edge_tile(i, e, ts, cnt), 0)),  # edge_attr
        pl.BlockSpec((1, te),    lambda i, e, ts, cnt: (0, edge_tile(i, e, ts, cnt))),  # dst ids
        pl.BlockSpec((tn, f_in), lambda i, e, ts, cnt: (i, 0)),                         # x tile
        pl.BlockSpec(memory_space=pltpu.MemorySpace.SMEM),                              # eps
        pl.BlockSpec((f_in, f_hid),  lambda i, e, ts, cnt: (0, 0)),                     # w1 (BN folded)
        pl.BlockSpec((1, f_hid),     lambda i, e, ts, cnt: (0, 0)),                     # b1 (BN folded)
        pl.BlockSpec((f_hid, f_out), lambda i, e, ts, cnt: (0, 0)),                     # w2
        pl.BlockSpec((1, f_out),     lambda i, e, ts, cnt: (0, 0)),                     # b2
    ]
    out_specs = pl.BlockSpec((tn, f_out), lambda i, e, ts, cnt: (i, 0))

    # cost estimate (post-restructure): scatter only over owned edge tiles + MLP
    total_scatter_steps = int(tile_count_np.sum()) if tile_count_np.size else 0
    flops = (2 * total_scatter_steps * tn * te * f_in
             + 2 * n_pad * (f_in * f_hid + f_hid * f_out))
    bytes_accessed = 4 * (total_scatter_steps * te * (2 * f_in + 1)
                          + 2 * n_pad * f_in
                          + w1_p.size + b1_p.size + w2_p.size + b2_p.size
                          + n_pad * f_out)
    cost = pl.CostEstimate(flops=int(flops), transcendentals=0,
                           bytes_accessed=int(bytes_accessed))

    out_p = pl.pallas_call(
        gine_kernel,
        out_shape=jax.ShapeDtypeStruct((n_pad, f_out), jnp.float32),
        grid_spec=pltpu.PrefetchScalarGridSpec(
            num_scalar_prefetch=2,
            grid=grid,
            in_specs=in_specs,
            out_specs=out_specs,
            scratch_shapes=[pltpu.VMEM((tn, f_in), jnp.float32)]),   # aggr accumulator
        compiler_params=pltpu.CompilerParams(
            dimension_semantics=("parallel", "arbitrary")),
        cost_estimate=cost,
    )(ts_arr, cnt_arr, xsrc_p, ea_p, dst_p, x_p, eps, w1_p, b1_p, w2_p, b2_p)

    return out_p[:n, :nout]


def gine_conv_ref(x, edge_index, edge_attr, params):
    """Pure-JAX reference (un-folded BN) for correctness check."""
    src, dst = edge_index[0], edge_index[1]
    msg = jax.nn.relu(x[src] + edge_attr)
    aggr = jnp.zeros_like(x).at[dst].add(msg)
    h = (1.0 + params["eps"]) * x + aggr
    h1 = h @ params["w1"]
    h1 = (h1 - params["bn_mean"]) * (params["bn_gamma"] *
                                     lax.rsqrt(params["bn_var"] + BN_EPS)) + params["bn_beta"]
    h1 = jax.nn.relu(h1)
    return h1 @ params["w2"] + params["b2"]


if __name__ == "__main__":
    key = jax.random.PRNGKey(0)
    N, E, nin, nout = 64, 600, 32, 32     # MLP hidden = nin

    k = jax.random.split(key, 8)
    x = jax.random.normal(k[0], (N, nin), jnp.float32)
    edge_attr = jax.random.normal(k[1], (E, nin), jnp.float32)
    src = jax.random.randint(k[2], (E,), 0, N, dtype=jnp.int32)
    dst = jax.random.randint(k[3], (E,), 0, N, dtype=jnp.int32)
    edge_index = jnp.stack([src, dst], axis=0)

    params = {
        # Linear1: nin -> nin, bias=False (followed by BN);  Linear2: nin -> nout, bias=True
        "w1": 0.1 * jax.random.normal(k[4], (nin, nin), jnp.float32),
        "w2": 0.1 * jax.random.normal(k[5], (nin, nout), jnp.float32),
        "b2": 0.01 * jax.random.normal(k[6], (nout,), jnp.float32),
        # GINEConv train_eps=True, initialized to 0
        "eps": jnp.float32(0.0),
        # BatchNorm1d default init (eval mode)
        "bn_gamma": jnp.ones((nin,), jnp.float32),
        "bn_beta": jnp.zeros((nin,), jnp.float32),
        "bn_mean": jnp.zeros((nin,), jnp.float32),
        "bn_var": jnp.ones((nin,), jnp.float32),
    }

    ref = gine_conv_ref(x, edge_index, edge_attr, params)

    # exact-precision path (f32 everywhere), multi node-tile / multi edge-tile grid
    out_f32 = gine_conv(x, edge_index, edge_attr, params,
                        tn=16, te=128, compute_dtype=jnp.float32)
    out_f32 = jax.block_until_ready(out_f32)
    assert out_f32.shape == (N, nout)
    assert jnp.allclose(out_f32, ref, atol=2e-4, rtol=2e-4), "f32 path mismatch vs reference"

    # fast path: scatter stays f32 (exact), only MLP weights/operands in bf16
    out_bf16 = gine_conv(x, edge_index, edge_attr, params,
                         compute_dtype=jnp.bfloat16)
    out_bf16 = jax.block_until_ready(out_bf16)
    assert out_bf16.shape == (N, nout)
    assert jnp.allclose(out_bf16, ref, atol=0.5, rtol=0.1), "bf16 MLP path mismatch vs reference"

    print("KERNEL_OK")
</pallas_src>

<mosaic_0001>
module attributes {stable_mosaic.version = 11 : i64} {
  func.func @gine_kernel(%arg0: i32, %arg1: i32, %arg2: memref<4xi32, #tpu.memory_space<smem>>, %arg3: memref<4xi32, #tpu.memory_space<smem>>, %arg4: memref<128x128xf32, #tpu.memory_space<vmem>>, %arg5: memref<128x128xf32, #tpu.memory_space<vmem>>, %arg6: memref<1x128xi32, #tpu.memory_space<vmem>>, %arg7: memref<16x128xf32, #tpu.memory_space<vmem>>, %arg8: memref<1x1xf32, #tpu.memory_space<smem>>, %arg9: memref<128x128xf32, #tpu.memory_space<vmem>>, %arg10: memref<1x128xf32, #tpu.memory_space<vmem>>, %arg11: memref<128x128xf32, #tpu.memory_space<vmem>>, %arg12: memref<1x128xf32, #tpu.memory_space<vmem>>, %arg13: memref<16x128xf32, #tpu.memory_space<vmem>>, %arg14: memref<16x128xf32, #tpu.memory_space<vmem>>) attributes {dimension_semantics = [#tpu.dimension_semantics<parallel>, #tpu.dimension_semantics<arbitrary>], iteration_bounds = array<i64: 4, 2>, scalar_prefetch = 2 : i64, scratch_operands = 1 : i64, tpu.core_type = #tpu.core_type<tc>, window_params = [{transform_indices = @transform_0, window_bounds = array<i64: 128, 128>}, {transform_indices = @transform_1, window_bounds = array<i64: 128, 128>}, {transform_indices = @transform_2, window_bounds = array<i64: 1, 128>}, {transform_indices = @transform_3, window_bounds = array<i64: 16, 128>}, {transform_indices = @transform_4, window_bounds = array<i64: 1, 1>}, {pipeline_mode = #tpu.pipeline_mode<synchronous>, transform_indices = @transform_5, window_bounds = array<i64: 128, 128>}, {pipeline_mode = #tpu.pipeline_mode<synchronous>, transform_indices = @transform_6, window_bounds = array<i64: 1, 128>}, {pipeline_mode = #tpu.pipeline_mode<synchronous>, transform_indices = @transform_7, window_bounds = array<i64: 128, 128>}, {pipeline_mode = #tpu.pipeline_mode<synchronous>, transform_indices = @transform_8, window_bounds = array<i64: 1, 128>}, {transform_indices = @transform_9, window_bounds = array<i64: 16, 128>}]} {
    %c0_i32 = arith.constant 0 : i32
    %0 = arith.cmpi eq, %arg1, %c0_i32 : i32
    %1 = arith.extui %0 : i1 to i32
    %c0_i32_0 = arith.constant 0 : i32
    %2 = arith.cmpi ne, %1, %c0_i32_0 : i32
    scf.if %2 {
      %cst = arith.constant 0.000000e+00 : f32
      %11 = vector.broadcast %cst : f32 to vector<16x128xf32>
      %c0 = arith.constant 0 : index
      %c0_3 = arith.constant 0 : index
      %12 = vector.load %arg14[%c0, %c0_3] : memref<16x128xf32, #tpu.memory_space<vmem>>, vector<16x128xf32>
      tpu.vector_store %arg14[%c0, %c0_3], %11 {strides = array<i32>} : memref<16x128xf32, #tpu.memory_space<vmem>>, vector<16x128xf32>,
    } else {
    }
    %3 = arith.index_cast %arg0 : i32 to index
    %4 = memref.load %arg3[%3] : memref<4xi32, #tpu.memory_space<smem>>
    %5 = arith.cmpi slt, %arg1, %4 : i32
    %6 = arith.extui %5 : i1 to i32
    %c0_i32_1 = arith.constant 0 : i32
    %7 = arith.cmpi ne, %6, %c0_i32_1 : i32
    scf.if %7 {
      %c0 = arith.constant 0 : index
      %c0_3 = arith.constant 0 : index
      %11 = vector.load %arg4[%c0, %c0_3] : memref<128x128xf32, #tpu.memory_space<vmem>>, vector<128x128xf32>
      %c0_4 = arith.constant 0 : index
      %c0_5 = arith.constant 0 : index
      %12 = vector.load %arg5[%c0_4, %c0_5] : memref<128x128xf32, #tpu.memory_space<vmem>>, vector<128x128xf32>
      %13 = arith.addf %11, %12 : vector<128x128xf32>
      %cst = arith.constant 0.000000e+00 : f32
      %14 = vector.broadcast %cst : f32 to vector<128x128xf32>
      %15 = arith.maximumf %13, %14 : vector<128x128xf32>
      %16 = tpu.iota {dimensions = array<i32: 0>} : vector<16x128xi32>
      %c16_i32 = arith.constant 16 : i32
      %17 = arith.muli %arg0, %c16_i32 : i32
      %18 = vector.broadcast %17 : i32 to vector<16x128xi32>
      %19 = arith.addi %16, %18 : vector<16x128xi32>
      %c0_6 = arith.constant 0 : index
      %c0_7 = arith.constant 0 : index
      %20 = vector.load %arg6[%c0_6, %c0_7] : memref<1x128xi32, #tpu.memory_space<vmem>>, vector<1x128xi32>
      %21 = vector.broadcast %20 : vector<1x128xi32> to vector<16x128xi32>
      %22 = arith.cmpi eq, %19, %21 : vector<16x128xi32>
      %23 = arith.extui %22 : vector<16x128xi1> to vector<16x128xi32>
      %24 = arith.sitofp %23 : vector<16x128xi32> to vector<16x128xf32>
      %c0_8 = arith.constant 0 : index
      %c0_9 = arith.constant 0 : index
      %25 = vector.load %arg14[%c0_8, %c0_9] : memref<16x128xf32, #tpu.memory_space<vmem>>, vector<16x128xf32>
      %cst_10 = arith.constant dense<0.000000e+00> : vector<16x128xf32>
      %26 = tpu.matmul %24, %15, %cst_10 {dimension_numbers = #tpu.dot_dimension_numbers<[1], [0], [0], [1], [0, 0, 1, 1], [], []>} : vector<16x128xf32>, vector<128x128xf32>, vector<16x128xf32> -> vector<16x128xf32>
      %27 = arith.addf %25, %26 : vector<16x128xf32>
      %c0_11 = arith.constant 0 : index
      %c0_12 = arith.constant 0 : index
      %28 = vector.load %arg14[%c0_11, %c0_12] : memref<16x128xf32, #tpu.memory_space<vmem>>, vector<16x128xf32>
      tpu.vector_store %arg14[%c0_11, %c0_12], %27 {strides = array<i32>} : memref<16x128xf32, #tpu.memory_space<vmem>>, vector<16x128xf32>,
    } else {
    }
    %c1_i32 = arith.constant 1 : i32
    %8 = arith.cmpi eq, %arg1, %c1_i32 : i32
    %9 = arith.extui %8 : i1 to i32
    %c0_i32_2 = arith.constant 0 : i32
    %10 = arith.cmpi ne, %9, %c0_i32_2 : i32
    scf.if %10 {
      %c0 = arith.constant 0 : index
      %c0_3 = arith.constant 0 : index
      %11 = memref.load %arg8[%c0, %c0_3] : memref<1x1xf32, #tpu.memory_space<smem>>
      %cst = arith.constant 1.000000e+00 : f32
      %12 = arith.addf %cst, %11 : f32
      %c0_4 = arith.constant 0 : index
      %c0_5 = arith.constant 0 : index
      %13 = vector.load %arg7[%c0_4, %c0_5] : memref<16x128xf32, #tpu.memory_space<vmem>>, vector<16x128xf32>
      %14 = vector.broadcast %12 : f32 to vector<16x128xf32>
      %15 = arith.mulf %14, %13 : vector<16x128xf32>
      %c0_6 = arith.constant 0 : index
      %c0_7 = arith.constant 0 : index
      %16 = vector.load %arg14[%c0_6, %c0_7] : memref<16x128xf32, #tpu.memory_space<vmem>>, vector<16x128xf32>
      %17 = arith.addf %15, %16 : vector<16x128xf32>
      %c0_8 = arith.constant 0 : index
      %c0_9 = arith.constant 0 : index
      %18 = vector.load %arg9[%c0_8, %c0_9] : memref<128x128xf32, #tpu.memory_space<vmem>>, vector<128x128xf32>
      %cst_10 = arith.constant dense<0.000000e+00> : vector<16x128xf32>
      %19 = tpu.matmul %17, %18, %cst_10 {dimension_numbers = #tpu.dot_dimension_numbers<[1], [0], [0], [1], [0, 0, 1, 1], [], []>} : vector<16x128xf32>, vector<128x128xf32>, vector<16x128xf32> -> vector<16x128xf32>
      %c0_11 = arith.constant 0 : index
      %c0_12 = arith.constant 0 : index
      %20 = vector.load %arg10[%c0_11, %c0_12] : memref<1x128xf32, #tpu.memory_space<vmem>>, vector<1x128xf32>
      %21 = vector.broadcast %20 : vector<1x128xf32> to vector<16x128xf32>
      %22 = arith.addf %19, %21 : vector<16x128xf32>
      %cst_13 = arith.constant 0.000000e+00 : f32
      %23 = vector.broadcast %cst_13 : f32 to vector<16x128xf32>
      %24 = arith.maximumf %22, %23 : vector<16x128xf32>
      %c0_14 = arith.constant 0 : index
      %c0_15 = arith.constant 0 : index
      %25 = vector.load %arg11[%c0_14, %c0_15] : memref<128x128xf32, #tpu.memory_space<vmem>>, vector<128x128xf32>
      %cst_16 = arith.constant dense<0.000000e+00> : vector<16x128xf32>
      %26 = tpu.matmul %24, %25, %cst_16 {dimension_numbers = #tpu.dot_dimension_numbers<[1], [0], [0], [1], [0, 0, 1, 1], [], []>} : vector<16x128xf32>, vector<128x128xf32>, vector<16x128xf32> -> vector<16x128xf32>
      %c0_17 = arith.constant 0 : index
      %c0_18 = arith.constant 0 : index
      %27 = vector.load %arg12[%c0_17, %c0_18] : memref<1x128xf32, #tpu.memory_space<vmem>>, vector<1x128xf32>
      %28 = vector.broadcast %27 : vector<1x128xf32> to vector<16x128xf32>
      %29 = arith.addf %26, %28 : vector<16x128xf32>
      %c0_19 = arith.constant 0 : index
      %c0_20 = arith.constant 0 : index
      %30 = vector.load %arg13[%c0_19, %c0_20] : memref<16x128xf32, #tpu.memory_space<vmem>>, vector<16x128xf32>
      tpu.vector_store %arg13[%c0_19, %c0_20], %29 {strides = array<i32>} : memref<16x128xf32, #tpu.memory_space<vmem>>, vector<16x128xf32>,
    } else {
    }
    return
  }
  func.func @transform_0(%arg0: i32, %arg1: i32, %arg2: memref<4xi32, #tpu.memory_space<smem>>, %arg3: memref<4xi32, #tpu.memory_space<smem>>) -> (i32, i32) {
    %0 = arith.index_cast %arg0 : i32 to index
    %1 = memref.load %arg2[%0] : memref<4xi32, #tpu.memory_space<smem>>
    %2 = arith.index_cast %arg0 : i32 to index
    %3 = memref.load %arg3[%2] : memref<4xi32, #tpu.memory_space<smem>>
    %c1_i32 = arith.constant 1 : i32
    %4 = arith.subi %3, %c1_i32 : i32
    %c0_i32 = arith.constant 0 : i32
    %5 = arith.maxsi %4, %c0_i32 : i32
    %6 = arith.minsi %arg1, %5 : i32
    %7 = arith.addi %1, %6 : i32
    %c0_i32_0 = arith.constant 0 : i32
    %c0_i32_1 = arith.constant 0 : i32
    return %7, %c0_i32_0 : i32, i32
  }
  func.func @transform_1(%arg0: i32, %arg1: i32, %arg2: memref<4xi32, #tpu.memory_space<smem>>, %arg3: memref<4xi32, #tpu.memory_space<smem>>) -> (i32, i32) {
    %0 = arith.index_cast %arg0 : i32 to index
    %1 = memref.load %arg2[%0] : memref<4xi32, #tpu.memory_space<smem>>
    %2 = arith.index_cast %arg0 : i32 to index
    %3 = memref.load %arg3[%2] : memref<4xi32, #tpu.memory_space<smem>>
    %c1_i32 = arith.constant 1 : i32
    %4 = arith.subi %3, %c1_i32 : i32
    %c0_i32 = arith.constant 0 : i32
    %5 = arith.maxsi %4, %c0_i32 : i32
    %6 = arith.minsi %arg1, %5 : i32
    %7 = arith.addi %1, %6 : i32
    %c0_i32_0 = arith.constant 0 : i32
    %c0_i32_1 = arith.constant 0 : i32
    return %7, %c0_i32_0 : i32, i32
  }
  func.func @transform_2(%arg0: i32, %arg1: i32, %arg2: memref<4xi32, #tpu.memory_space<smem>>, %arg3: memref<4xi32, #tpu.memory_space<smem>>) -> (i32, i32) {
    %0 = arith.index_cast %arg0 : i32 to index
    %1 = memref.load %arg2[%0] : memref<4xi32, #tpu.memory_space<smem>>
    %2 = arith.index_cast %arg0 : i32 to index
    %3 = memref.load %arg3[%2] : memref<4xi32, #tpu.memory_space<smem>>
    %c1_i32 = arith.constant 1 : i32
    %4 = arith.subi %3, %c1_i32 : i32
    %c0_i32 = arith.constant 0 : i32
    %5 = arith.maxsi %4, %c0_i32 : i32
    %6 = arith.minsi %arg1, %5 : i32
    %7 = arith.addi %1, %6 : i32
    %c0_i32_0 = arith.constant 0 : i32
    %c0_i32_1 = arith.constant 0 : i32
    return %c0_i32_0, %7 : i32, i32
  }
  func.func @transform_3(%arg0: i32, %arg1: i32, %arg2: memref<4xi32, #tpu.memory_space<smem>>, %arg3: memref<4xi32, #tpu.memory_space<smem>>) -> (i32, i32) {
    %c0_i32 = arith.constant 0 : i32
    %c0_i32_0 = arith.constant 0 : i32
    return %arg0, %c0_i32 : i32, i32
  }
  func.func @transform_4(%arg0: i32, %arg1: i32, %arg2: memref<4xi32, #tpu.memory_space<smem>>, %arg3: memref<4xi32, #tpu.memory_space<smem>>) -> (i32, i32) {
    %c0_i32 = arith.constant 0 : i32
    %c0_i32_0 = arith.constant 0 : i32
    %c0_i32_1 = arith.constant 0 : i32
    return %c0_i32, %c0_i32_0 : i32, i32
  }
  func.func @transform_5(%arg0: i32, %arg1: i32, %arg2: memref<4xi32, #tpu.memory_space<smem>>, %arg3: memref<4xi32, #tpu.memory_space<smem>>) -> (i32, i32) {
    %c0_i32 = arith.constant 0 : i32
    %c0_i32_0 = arith.constant 0 : i32
    %c0_i32_1 = arith.constant 0 : i32
    return %c0_i32, %c0_i32_0 : i32, i32
  }
  func.func @transform_6(%arg0: i32, %arg1: i32, %arg2: memref<4xi32, #tpu.memory_space<smem>>, %arg3: memref<4xi32, #tpu.memory_space<smem>>) -> (i32, i32) {
    %c0_i32 = arith.constant 0 : i32
    %c0_i32_0 = arith.constant 0 : i32
    %c0_i32_1 = arith.constant 0 : i32
    return %c0_i32, %c0_i32_0 : i32, i32
  }
  func.func @transform_7(%arg0: i32, %arg1: i32, %arg2: memref<4xi32, #tpu.memory_space<smem>>, %arg3: memref<4xi32, #tpu.memory_space<smem>>) -> (i32, i32) {
    %c0_i32 = arith.constant 0 : i32
    %c0_i32_0 = arith.constant 0 : i32
    %c0_i32_1 = arith.constant 0 : i32
    return %c0_i32, %c0_i32_0 : i32, i32
  }
  func.func @transform_8(%arg0: i32, %arg1: i32, %arg2: memref<4xi32, #tpu.memory_space<smem>>, %arg3: memref<4xi32, #tpu.memory_space<smem>>) -> (i32, i32) {
    %c0_i32 = arith.constant 0 : i32
    %c0_i32_0 = arith.constant 0 : i32
    %c0_i32_1 = arith.constant 0 : i32
    return %c0_i32, %c0_i32_0 : i32, i32
  }
  func.func @transform_9(%arg0: i32, %arg1: i32, %arg2: memref<4xi32, #tpu.memory_space<smem>>, %arg3: memref<4xi32, #tpu.memory_space<smem>>) -> (i32, i32) {
    %c0_i32 = arith.constant 0 : i32
    %c0_i32_0 = arith.constant 0 : i32
    return %arg0, %c0_i32 : i32, i32
  }
}

</mosaic_0001>

<llo_original>
// kernel: tpu_custom_call.1
$region0: #{tpu_custom_call.1}
  #allocation0 [shape = 'u32[]', space=smem, size = 0x4, offset = 0x4, fixed_abs, tag = 'smem constant byte address 0x4 - core index']
  #allocation1 [shape = 'u32[144,128]{1,0:T(1,128)}', space=vmem, size = 0x12000, scoped, tag = 'internal scratch']
  #allocation2 [shape = 'f32[16,128]{1,0:T(8,128)}', space=vmem, size = 0x2000, scoped, tag = 'scratch operand']
  #allocation3 [shape = 's32[1]{0}', space=sflag, size = 0x4, scoped, tag = 'scoped memory for tpu_custom_call.1']
  #allocation4 [shape = 'u8[512]{0}', space=smem, size = 0x200, scoped, tag = 'prefetched SMEM operand 0']
  #allocation5 [shape = 'u8[512]{0}', space=smem, size = 0x200, scoped, tag = 'prefetched SMEM operand 1']
  #allocation6 [shape = 'f32[1,1]{1,0:T(1,128)S(6)}', space=smem, size = 0x200, scoped, tag = 'scoped memory for tpu_custom_call.1']
  %s0 = inlined_call_operand.vmem [shape: s32[4], index: 0, kind: input, shape index: {}]
  %s1 = inlined_call_operand.vmem [shape: s32[4], index: 1, kind: input, shape index: {}]
  %s2 = inlined_call_operand.hbm [shape: f32[640,128], index: 2, kind: input, shape index: {}]
  %s3 = inlined_call_operand.hbm [shape: f32[640,128], index: 3, kind: input, shape index: {}]
  %s4 = inlined_call_operand.vmem [shape: s32[1,640], index: 4, kind: input, shape index: {}]
  %s5 = inlined_call_operand.hbm [shape: f32[64,128], index: 5, kind: input, shape index: {}]
  %s6 = inlined_call_operand.<no memory space> [shape: f32[1,1], index: 6, kind: input, shape index: {}]
  %s7 = inlined_call_operand.hbm [shape: f32[128,128], index: 7, kind: input, shape index: {}]
  %s8 = inlined_call_operand.vmem [shape: f32[1,128], index: 8, kind: input, shape index: {}]
  %s9 = inlined_call_operand.hbm [shape: f32[128,128], index: 9, kind: input, shape index: {}]
  %s10 = inlined_call_operand.vmem [shape: f32[1,128], index: 10, kind: input, shape index: {}]
  %s11 = inlined_call_operand.hbm [shape: f32[64,128], index: 11, kind: output, shape index: {}]
  %s12 = sld [smem:[#allocation0]]
  $region101: #{tpu_custom_call.1} parent=0
    _
  %s14 = ssub.s32 1, %s12
  %s15 = scalar_select 0, %s14, %s12
  %s16 = sshll.u32 %s0, 4
  %s17 = int_to_ptr.vmem [resolvable:$true] %s16
  %19 = dma.vmem_to_smem %s17, 16, [#allocation4], [#allocation3]
  %s20 = sshll.u32 %s1, 4
  %s21 = int_to_ptr.vmem [resolvable:$true] %s20
  %23 = dma.vmem_to_smem %s21, 16, [#allocation5], [#allocation3]
  %24 = sst [smem:[#allocation6]] %s6
  %25 = dma.done [#allocation3], 32
  %26 = sfence
  $region1: #{tpu_custom_call.1} parent=0
    #allocation7 [shape = 'u8[131072]{0}', space=vmem, size = 0x20000, scoped, tag = 'input window, operand 2']
    #allocation8 [shape = 's32[2]{0}', space=sflag, size = 0x8, scoped, tag = 'scoped memory for tpu_custom_call.1']
    #allocation9 [shape = 's32[2]{0}', space=sflag, size = 0x8, scoped, tag = 'scoped memory for tpu_custom_call.1']
    #allocation10 [shape = 'u8[131072]{0}', space=vmem, size = 0x20000, scoped, tag = 'input window, operand 3']
    #allocation11 [shape = 's32[2]{0}', space=sflag, size = 0x8, scoped, tag = 'scoped memory for tpu_custom_call.1']
    #allocation12 [shape = 'u8[16384]{0}', space=vmem, size = 0x4000, scoped, tag = 'input window, operand 5']
    #allocation13 [shape = 'u8[65536]{0}', space=vmem, size = 0x10000, scoped, tag = 'input window, operand 7, single buffered']
    #allocation14 [shape = 's32[1]{0}', space=sflag, size = 0x4, scoped, tag = 'scoped memory for tpu_custom_call.1']
    #allocation15 [shape = 'u8[65536]{0}', space=vmem, size = 0x10000, scoped, tag = 'input window, operand 9, single buffered']
    #allocation16 [shape = 'u8[16384]{0}', space=vmem, size = 0x4000, scoped, tag = 'output window, operand 0']
    %27 = vsyncpa [#allocation8], 0
    %s28 = scalar_lea.sflag [#allocation8], 1
    %29 = vsyncpa %s28, 0
    %30 = vsyncpa [#allocation11], 0
    %s31 = scalar_lea.sflag [#allocation11], 1
    %32 = vsyncpa %s31, 0
    %33 = vsyncpa [#allocation14], 0
    %34 = vsyncpa [#allocation9], 0
    %s35 = scalar_lea.sflag [#allocation9], 1
    %36 = vsyncpa %s35, 0
    loop: start=0, step=1, limit=10
    $region2: #{tpu_custom_call.1} parent=1 // loop_pre_header
      _
    $region3: #{tpu_custom_call.1} parent=1 // loop_header
      %s38 = sphi 0, %s42
      %p39 = scmp.ge.s32.totalorder %s38, 10
      %s45 = sphi 0, %s57
      %s46 = sphi 0, %s53
      %s47 = sphi 0, %s45
      %s48 = sphi 0, %s46
      %s49 = sphi 0, %s47
      %s50 = sphi 0, %s48
      %s76 = sphi 0, %s78
      %s79 = sphi 0, %s76
      %s80 = sphi 0, %s79
      %s96 = sphi 0, %s80
      %s118 = sphi 0, %s120
      %s121 = sphi 0, %s118
      %s122 = sphi 0, %s121
      %s138 = sphi 0, %s122
      %s160 = sphi 0, %s162
      %s163 = sphi 0, %s160
      %s164 = sphi 0, %s163
      %s180 = sphi 0, %s164
      %s186 = sphi 0, %s188
      %s189 = sphi 0, %s186
      %s190 = sphi 0, %s189
      %s206 = sphi 0, %s190
      %s210 = sphi 0, %s210
      %s212 = sphi 0, %s210
      %s213 = sphi 0, %s212
      %s227 = sphi 0, %s213
      %s231 = sphi 0, %s231
      %s233 = sphi 0, %s231
      %s234 = sphi 0, %s233
      %s248 = sphi 0, %s234
      %s252 = sphi 0, %s252
      %s254 = sphi 0, %s252
      %s255 = sphi 0, %s254
      %s269 = sphi 0, %s255
      %s273 = sphi 0, %s273
      %s275 = sphi 0, %s273
      %s276 = sphi 0, %s275
      %s290 = sphi 0, %s276
      %s294 = sphi 0, %s294
      %s296 = sphi 0, %s294
      %s297 = sphi 0, %s296
      %s311 = sphi 0, %s297
      %s317 = sphi 0, %s319
      %s320 = sphi 0, %s317
      %s321 = sphi 0, %s320
      %s337 = sphi 0, %s321
    $region4: #{tpu_custom_call.1} parent=1 // loop_header_branch
      %41 = sbr.rel (%p39) target = $region8
    $region5: #{tpu_custom_call.1} parent=1 // loop_body
      %s43 = ssub.s32 %s38, 1
      %s44 = ssub.s32 %s38, 2
      %s51 = sadd.s32 1, %s46
      %p52 = scmp.ge.s32.totalorder %s51, 2
      %s53 = scalar_select %p52, 0, %s51
      %s54 = sadd.s32 1, %s45
      %s55 = scalar_select %p52, %s54, %s45
      %p56 = scmp.ge.s32.totalorder %s55, 4
      %s57 = scalar_select %p56, 0, %s55
      %s58 = sld [smem:[#allocation4 + %s45]]
      %s59 = sld [smem:[#allocation5 + %s45]]
      %s60 = ssub.s32 %s59, 1
      %p61 = scmp.gt.s32.totalorder %s60, 0
      %s62 = scalar_select %p61, %s60, 0
      %p63 = scmp.lt.s32.totalorder %s46, %s62
      %s64 = scalar_select %p63, %s46, %s62
      %s65 = sadd.s32 %s58, %s64
      %s66 = sld [smem:[#allocation4 + %s57]]
      %s67 = sld [smem:[#allocation5 + %s57]]
      %s68 = ssub.s32 %s67, 1
      %p69 = scmp.gt.s32.totalorder %s68, 0
      %s70 = scalar_select %p69, %s68, 0
      %p71 = scmp.lt.s32.totalorder %s53, %s70
      %s72 = scalar_select %p71, %s53, %s70
      %s73 = sadd.s32 %s66, %s72
      %s74 = ssub.s32 %s65, %s73
      %p75 = scmp.eq.s32.totalorder %s74, 0
      %s77 = sadd.s32 %s76, 1
      %s78 = scalar_select %p75, %s76, %s77
      %p81 = pneg %p75
      %p82 = scmp.eq.s32.totalorder %s38, 7
      %p83 = por %p81, %p82
      %p84 = scmp.ne.s32.totalorder %s76, %s79
      %p85 = scmp.eq.s32.totalorder %s38, 0
      %p86 = por %p84, %p85
      %p87 = scmp.ne.s32.totalorder %s76, %s79
      %p88 = scmp.eq.s32.totalorder %s43, 7
      %p89 = por %p87, %p88
      %p90 = scmp.ne.s32.totalorder %s79, %s80
      %p91 = scmp.eq.s32.totalorder %s43, 0
      %p92 = por %p90, %p91
      %p93 = scmp.ne.s32.totalorder %s79, %s80
      %p94 = scmp.eq.s32.totalorder %s44, 7
      %p95 = por %p93, %p94
      %p97 = scmp.ne.s32.totalorder %s80, %s96
      %p98 = scmp.eq.s32.totalorder %s44, 0
      %p99 = por %p97, %p98
      %s100 = sld [smem:[#allocation4 + %s45]]
      %s101 = sld [smem:[#allocation5 + %s45]]
      %s102 = ssub.s32 %s101, 1
      %p103 = scmp.gt.s32.totalorder %s102, 0
      %s104 = scalar_select %p103, %s102, 0
      %p105 = scmp.lt.s32.totalorder %s46, %s104
      %s106 = scalar_select %p105, %s46, %s104
      %s107 = sadd.s32 %s100, %s106
      %s108 = sld [smem:[#allocation4 + %s57]]
      %s109 = sld [smem:[#allocation5 + %s57]]
      %s110 = ssub.s32 %s109, 1
      %p111 = scmp.gt.s32.totalorder %s110, 0
      %s112 = scalar_select %p111, %s110, 0
      %p113 = scmp.lt.s32.totalorder %s53, %s112
      %s114 = scalar_select %p113, %s53, %s112
      %s115 = sadd.s32 %s108, %s114
      %s116 = ssub.s32 %s107, %s115
      %p117 = scmp.eq.s32.totalorder %s116, 0
      %s119 = sadd.s32 %s118, 1
      %s120 = scalar_select %p117, %s118, %s119
      %p123 = pneg %p117
      %p124 = scmp.eq.s32.totalorder %s38, 7
      %p125 = por %p123, %p124
      %p126 = scmp.ne.s32.totalorder %s118, %s121
      %p127 = scmp.eq.s32.totalorder %s38, 0
      %p128 = por %p126, %p127
      %p129 = scmp.ne.s32.totalorder %s118, %s121
      %p130 = scmp.eq.s32.totalorder %s43, 7
      %p131 = por %p129, %p130
      %p132 = scmp.ne.s32.totalorder %s121, %s122
      %p133 = scmp.eq.s32.totalorder %s43, 0
      %p134 = por %p132, %p133
      %p135 = scmp.ne.s32.totalorder %s121, %s122
      %p136 = scmp.eq.s32.totalorder %s44, 7
      %p137 = por %p135, %p136
      %p139 = scmp.ne.s32.totalorder %s122, %s138
      %p140 = scmp.eq.s32.totalorder %s44, 0
      %p141 = por %p139, %p140
      %s142 = sld [smem:[#allocation4 + %s45]]
      %s143 = sld [smem:[#allocation5 + %s45]]
      %s144 = ssub.s32 %s143, 1
      %p145 = scmp.gt.s32.totalorder %s144, 0
      %s146 = scalar_select %p145, %s144, 0
      %p147 = scmp.lt.s32.totalorder %s46, %s146
      %s148 = scalar_select %p147, %s46, %s146
      %s149 = sadd.s32 %s142, %s148
      %s150 = sld [smem:[#allocation4 + %s57]]
      %s151 = sld [smem:[#allocation5 + %s57]]
      %s152 = ssub.s32 %s151, 1
      %p153 = scmp.gt.s32.totalorder %s152, 0
      %s154 = scalar_select %p153, %s152, 0
      %p155 = scmp.lt.s32.totalorder %s53, %s154
      %s156 = scalar_select %p155, %s53, %s154
      %s157 = sadd.s32 %s150, %s156
      %s158 = ssub.s32 %s149, %s157
      %p159 = scmp.eq.s32.totalorder %s158, 0
      %s161 = sadd.s32 %s160, 1
      %s162 = scalar_select %p159, %s160, %s161
      %p165 = pneg %p159
      %p166 = scmp.eq.s32.totalorder %s38, 7
      %p167 = por %p165, %p166
      %p168 = scmp.ne.s32.totalorder %s160, %s163
      %p169 = scmp.eq.s32.totalorder %s38, 0
      %p170 = por %p168, %p169
      %p171 = scmp.ne.s32.totalorder %s160, %s163
      %p172 = scmp.eq.s32.totalorder %s43, 7
      %p173 = por %p171, %p172
      %p174 = scmp.ne.s32.totalorder %s163, %s164
      %p175 = scmp.eq.s32.totalorder %s43, 0
      %p176 = por %p174, %p175
      %p177 = scmp.ne.s32.totalorder %s163, %s164
      %p178 = scmp.eq.s32.totalorder %s44, 7
      %p179 = por %p177, %p178
      %p181 = scmp.ne.s32.totalorder %s164, %s180
      %p182 = scmp.eq.s32.totalorder %s44, 0
      %p183 = por %p181, %p182
      %s184 = ssub.s32 %s45, %s57
      %p185 = scmp.eq.s32.totalorder %s184, 0
      %s187 = sadd.s32 %s186, 1
      %s188 = scalar_select %p185, %s186, %s187
      %p191 = pneg %p185
      %p192 = scmp.eq.s32.totalorder %s38, 7
      %p193 = por %p191, %p192
      %p194 = scmp.ne.s32.totalorder %s186, %s189
      %p195 = scmp.eq.s32.totalorder %s38, 0
      %p196 = por %p194, %p195
      %p197 = scmp.ne.s32.totalorder %s186, %s189
      %p198 = scmp.eq.s32.totalorder %s43, 7
      %p199 = por %p197, %p198
      %p200 = scmp.ne.s32.totalorder %s189, %s190
      %p201 = scmp.eq.s32.totalorder %s43, 0
      %p202 = por %p200, %p201
      %p203 = scmp.ne.s32.totalorder %s189, %s190
      %p204 = scmp.eq.s32.totalorder %s44, 7
      %p205 = por %p203, %p204
      %p207 = scmp.ne.s32.totalorder %s190, %s206
      %p208 = scmp.eq.s32.totalorder %s44, 0
      %p209 = por %p207, %p208
      %s211 = sadd.s32 %s210, 1
      %p214 = scmp.eq.s32.totalorder %s38, 7
      %p215 = scmp.ne.s32.totalorder %s210, %s212
      %p216 = scmp.eq.s32.totalorder %s38, 0
      %p217 = por %p215, %p216
      %p218 = scmp.ne.s32.totalorder %s210, %s212
      %p219 = scmp.eq.s32.totalorder %s43, 7
      %p220 = por %p218, %p219
      %p221 = scmp.ne.s32.totalorder %s212, %s213
      %p222 = scmp.eq.s32.totalorder %s43, 0
      %p223 = por %p221, %p222
      %p224 = scmp.ne.s32.totalorder %s212, %s213
      %p225 = scmp.eq.s32.totalorder %s44, 7
      %p226 = por %p224, %p225
      %p228 = scmp.ne.s32.totalorder %s213, %s227
      %p229 = scmp.eq.s32.totalorder %s44, 0
      %p230 = por %p228, %p229
      %s232 = sadd.s32 %s231, 1
      %p235 = scmp.eq.s32.totalorder %s38, 7
      %p236 = scmp.ne.s32.totalorder %s231, %s233
      %p237 = scmp.eq.s32.totalorder %s38, 0
      %p238 = por %p236, %p237
      %p239 = scmp.ne.s32.totalorder %s231, %s233
      %p240 = scmp.eq.s32.totalorder %s43, 7
      %p241 = por %p239, %p240
      %p242 = scmp.ne.s32.totalorder %s233, %s234
      %p243 = scmp.eq.s32.totalorder %s43, 0
      %p244 = por %p242, %p243
      %p245 = scmp.ne.s32.totalorder %s233, %s234
      %p246 = scmp.eq.s32.totalorder %s44, 7
      %p247 = por %p245, %p246
      %p249 = scmp.ne.s32.totalorder %s234, %s248
      %p250 = scmp.eq.s32.totalorder %s44, 0
      %p251 = por %p249, %p250
      %s253 = sadd.s32 %s252, 1
      %p256 = scmp.eq.s32.totalorder %s38, 7
      %p257 = scmp.ne.s32.totalorder %s252, %s254
      %p258 = scmp.eq.s32.totalorder %s38, 0
      %p259 = por %p257, %p258
      %p260 = scmp.ne.s32.totalorder %s252, %s254
      %p261 = scmp.eq.s32.totalorder %s43, 7
      %p262 = por %p260, %p261
      %p263 = scmp.ne.s32.totalorder %s254, %s255
      %p264 = scmp.eq.s32.totalorder %s43, 0
      %p265 = por %p263, %p264
      %p266 = scmp.ne.s32.totalorder %s254, %s255
      %p267 = scmp.eq.s32.totalorder %s44, 7
      %p268 = por %p266, %p267
      %p270 = scmp.ne.s32.totalorder %s255, %s269
      %p271 = scmp.eq.s32.totalorder %s44, 0
      %p272 = por %p270, %p271
      %s274 = sadd.s32 %s273, 1
      %p277 = scmp.eq.s32.totalorder %s38, 7
      %p278 = scmp.ne.s32.totalorder %s273, %s275
      %p279 = scmp.eq.s32.totalorder %s38, 0
      %p280 = por %p278, %p279
      %p281 = scmp.ne.s32.totalorder %s273, %s275
      %p282 = scmp.eq.s32.totalorder %s43, 7
      %p283 = por %p281, %p282
      %p284 = scmp.ne.s32.totalorder %s275, %s276
      %p285 = scmp.eq.s32.totalorder %s43, 0
      %p286 = por %p284, %p285
      %p287 = scmp.ne.s32.totalorder %s275, %s276
      %p288 = scmp.eq.s32.totalorder %s44, 7
      %p289 = por %p287, %p288
      %p291 = scmp.ne.s32.totalorder %s276, %s290
      %p292 = scmp.eq.s32.totalorder %s44, 0
      %p293 = por %p291, %p292
      %s295 = sadd.s32 %s294, 1
      %p298 = scmp.eq.s32.totalorder %s38, 7
      %p299 = scmp.ne.s32.totalorder %s294, %s296
      %p300 = scmp.eq.s32.totalorder %s38, 0
      %p301 = por %p299, %p300
      %p302 = scmp.ne.s32.totalorder %s294, %s296
      %p303 = scmp.eq.s32.totalorder %s43, 7
      %p304 = por %p302, %p303
      %p305 = scmp.ne.s32.totalorder %s296, %s297
      %p306 = scmp.eq.s32.totalorder %s43, 0
      %p307 = por %p305, %p306
      %p308 = scmp.ne.s32.totalorder %s296, %s297
      %p309 = scmp.eq.s32.totalorder %s44, 7
      %p310 = por %p308, %p309
      %p312 = scmp.ne.s32.totalorder %s297, %s311
      %p313 = scmp.eq.s32.totalorder %s44, 0
      %p314 = por %p312, %p313
      %s315 = ssub.s32 %s45, %s57
      %p316 = scmp.eq.s32.totalorder %s315, 0
      %s318 = sadd.s32 %s317, 1
      %s319 = scalar_select %p316, %s317, %s318
      %p322 = pneg %p316
      %p323 = scmp.eq.s32.totalorder %s38, 7
      %p324 = por %p322, %p323
      %p325 = scmp.ne.s32.totalorder %s317, %s320
      %p326 = scmp.eq.s32.totalorder %s38, 0
      %p327 = por %p325, %p326
      %p328 = scmp.ne.s32.totalorder %s317, %s320
      %p329 = scmp.eq.s32.totalorder %s43, 7
      %p330 = por %p328, %p329
      %p331 = scmp.ne.s32.totalorder %s320, %s321
      %p332 = scmp.eq.s32.totalorder %s43, 0
      %p333 = por %p331, %p332
      %p334 = scmp.ne.s32.totalorder %s320, %s321
      %p335 = scmp.eq.s32.totalorder %s44, 7
      %p336 = por %p334, %p335
      %p338 = scmp.ne.s32.totalorder %s321, %s337
      %p339 = scmp.eq.s32.totalorder %s44, 0
      %p340 = por %p338, %p339
      %p341 = scmp.le.s32.totalorder 1, %s38
      %p342 = scmp.lt.s32.totalorder %s38, 9
      %p343 = pnand %p341, %p342
      %p344 = pneg %p343
      // Predicated region
      $region9: #{tpu_custom_call.1} parent=5 // pred_check
        _
      $region10: #{tpu_custom_call.1} parent=5 // pred_check_branch
        %346 = sbr.rel (%p343) target = $region12
      $region11: #{tpu_custom_call.1} parent=5 // pred_region
        %s347 = ssub.s32 %s38, 1
        // Predicated region
        $region13: #{tpu_custom_call.1} parent=11 // pred_check
          %p348 = pneg %p223
        $region14: #{tpu_custom_call.1} parent=11 // pred_check_branch
          %350 = sbr.rel (%p348) target = $region16
        $region15: #{tpu_custom_call.1} parent=11 // pred_region
          _
        $region16: #{tpu_custom_call.1} parent=11 // pred_fallthru
          _
        // Predicated region
        $region17: #{tpu_custom_call.1} parent=11 // pred_check
          %p351 = pneg %p244
        $region18: #{tpu_custom_call.1} parent=11 // pred_check_branch
          %353 = sbr.rel (%p351) target = $region20
        $region19: #{tpu_custom_call.1} parent=11 // pred_region
          %s355 = ssub.s32 2048, 2048
          %356 = vsyncadd [#allocation14], %s355
          %s357 = sshll.u32 [#allocation13], 4
          %s358 = int_to_ptr.vmem [resolvable:$true] %s357
          %363 = dma.hbm_to_vmem [thread:$0]  %s7, 2048, %s358, [#allocation14], 128, 128, 8
        $region20: #{tpu_custom_call.1} parent=11 // pred_fallthru
          _
        // Predicated region
        $region21: #{tpu_custom_call.1} parent=11 // pred_check
          %p364 = pneg %p265
        $region22: #{tpu_custom_call.1} parent=11 // pred_check_branch
          %366 = sbr.rel (%p364) target = $region24
        $region23: #{tpu_custom_call.1} parent=11 // pred_region
          _
        $region24: #{tpu_custom_call.1} parent=11 // pred_fallthru
          _
        // Predicated region
        $region25: #{tpu_custom_call.1} parent=11 // pred_check
          %p367 = pneg %p286
        $region26: #{tpu_custom_call.1} parent=11 // pred_check_branch
          %369 = sbr.rel (%p367) target = $region28
        $region27: #{tpu_custom_call.1} parent=11 // pred_region
          %s371 = ssub.s32 2048, 2048
          %372 = vsyncadd [#allocation14], %s371
          %s373 = sshll.u32 [#allocation15], 4
          %s374 = int_to_ptr.vmem [resolvable:$true] %s373
          %379 = dma.hbm_to_vmem [thread:$0]  %s9, 2048, %s374, [#allocation14], 128, 128, 8
        $region28: #{tpu_custom_call.1} parent=11 // pred_fallthru
          _
        // Predicated region
        $region29: #{tpu_custom_call.1} parent=11 // pred_check
          %p380 = pneg %p307
        $region30: #{tpu_custom_call.1} parent=11 // pred_check_branch
          %382 = sbr.rel (%p380) target = $region32
        $region31: #{tpu_custom_call.1} parent=11 // pred_region
          _
        $region32: #{tpu_custom_call.1} parent=11 // pred_fallthru
          _
      $region12: #{tpu_custom_call.1} parent=5 // pred_fallthru
        _
      %p383 = scmp.lt.s32.totalorder %s38, 8
      // Predicated region
      $region33: #{tpu_custom_call.1} parent=5 // pred_check
        %p384 = pneg %p383
      $region34: #{tpu_custom_call.1} parent=5 // pred_check_branch
        %386 = sbr.rel (%p384) target = $region36
      $region35: #{tpu_custom_call.1} parent=5 // pred_region
        // Predicated region
        $region37: #{tpu_custom_call.1} parent=35 // pred_check
          %p387 = pneg %p86
        $region38: #{tpu_custom_call.1} parent=35 // pred_check_branch
          %389 = sbr.rel (%p387) target = $region40
        $region39: #{tpu_custom_call.1} parent=35 // pred_region
          %s390 = sand.u32 %s76, 1
          %s391 = scalar_lea.sflag [#allocation8], %s390
          %s392 = sand.u32 %s76, 1
          %s393 = smul.addr %s392, 128
          %s394 = scalar_lea.vmem [#allocation7], %s393
          %s395 = sld [smem:[#allocation4 + %s45]]
          %s396 = sld [smem:[#allocation5 + %s45]]
          %s397 = ssub.s32 %s396, 1
          %p398 = scmp.gt.s32.totalorder %s397, 0
          %s399 = scalar_select %p398, %s397, 0
          %p400 = scmp.lt.s32.totalorder %s46, %s399
          %s401 = scalar_select %p400, %s46, %s399
          %s402 = sadd.s32 %s395, %s401
          %s403 = smul.u32 16, %s402
          %s405 = ssub.s32 2048, 2048
          %406 = vsyncadd %s391, %s405
          %s407 = smul.addr %s403, 128
          %s408 = scalar_lea.hbm %s2, %s407
          %s409 = sshll.u32 %s394, 4
          %s410 = int_to_ptr.vmem [resolvable:$true] %s409
          %415 = dma.hbm_to_vmem [thread:$0]  %s408, 2048, %s410, %s391, 128, 128, 8
        $region40: #{tpu_custom_call.1} parent=35 // pred_fallthru
          _
        // Predicated region
        $region41: #{tpu_custom_call.1} parent=35 // pred_check
          %p416 = pneg %p128
        $region42: #{tpu_custom_call.1} parent=35 // pred_check_branch
          %418 = sbr.rel (%p416) target = $region44
        $region43: #{tpu_custom_call.1} parent=35 // pred_region
          %s419 = sand.u32 %s38, 1
          %s420 = scalar_lea.sflag [#allocation11], %s419
          %s421 = sand.u32 %s118, 1
          %s422 = smul.addr %s421, 128
          %s423 = scalar_lea.vmem [#allocation10], %s422
          %s424 = sld [smem:[#allocation4 + %s45]]
          %s425 = sld [smem:[#allocation5 + %s45]]
          %s426 = ssub.s32 %s425, 1
          %p427 = scmp.gt.s32.totalorder %s426, 0
          %s428 = scalar_select %p427, %s426, 0
          %p429 = scmp.lt.s32.totalorder %s46, %s428
          %s430 = scalar_select %p429, %s46, %s428
          %s431 = sadd.s32 %s424, %s430
          %s432 = smul.u32 16, %s431
          %s434 = ssub.s32 2048, 2048
          %435 = vsyncadd %s420, %s434
          %s436 = smul.addr %s432, 128
          %s437 = scalar_lea.hbm %s3, %s436
          %s438 = sshll.u32 %s423, 4
          %s439 = int_to_ptr.vmem [resolvable:$true] %s438
          %444 = dma.hbm_to_vmem [thread:$0]  %s437, 2048, %s439, %s420, 128, 128, 8
        $region44: #{tpu_custom_call.1} parent=35 // pred_fallthru
          _
        // Predicated region
        $region45: #{tpu_custom_call.1} parent=35 // pred_check
          %p445 = pneg %p170
        $region46: #{tpu_custom_call.1} parent=35 // pred_check_branch
          %447 = sbr.rel (%p445) target = $region48
        $region47: #{tpu_custom_call.1} parent=35 // pred_region
          %s448 = sld [smem:[#allocation4 + %s45]]
          %s449 = sld [smem:[#allocation5 + %s45]]
          %s450 = ssub.s32 %s449, 1
          %p451 = scmp.gt.s32.totalorder %s450, 0
          %s452 = scalar_select %p451, %s450, 0
          %p453 = scmp.lt.s32.totalorder %s46, %s452
          %s454 = scalar_select %p453, %s46, %s452
          %s455 = sadd.s32 %s448, %s454
          %p456 = scmp.lt.s32.totalorder %s455, 4
          %s457 = scalar_select %p456, %s455, 4
          %s458 = scalar_lea.vmem %s4, %s457
          %s459 = sld [smem:[#allocation4 + %s45]]
          %s460 = sld [smem:[#allocation5 + %s45]]
          %s461 = ssub.s32 %s460, 1
          %p462 = scmp.gt.s32.totalorder %s461, 0
          %s463 = scalar_select %p462, %s461, 0
          %p464 = scmp.lt.s32.totalorder %s46, %s463
          %s465 = scalar_select %p464, %s46, %s463
          %s466 = sadd.s32 %s459, %s465
        $region48: #{tpu_custom_call.1} parent=35 // pred_fallthru
          _
        // Predicated region
        $region49: #{tpu_custom_call.1} parent=35 // pred_check
          %p467 = pneg %p196
        $region50: #{tpu_custom_call.1} parent=35 // pred_check_branch
          %469 = sbr.rel (%p467) target = $region52
        $region51: #{tpu_custom_call.1} parent=35 // pred_region
          %s470 = sand.u32 %s38, 1
          %s471 = scalar_lea.sflag [#allocation11], %s470
          %s472 = sand.u32 %s186, 1
          %s473 = smul.addr %s472, 16
          %s474 = scalar_lea.vmem [#allocation12], %s473
          %s475 = smul.u32 2, %s45
          %s477 = ssub.s32 256, 256
          %478 = vsyncadd %s471, %s477
          %s479 = smul.addr %s475, 128
          %s480 = scalar_lea.hbm %s5, %s479
          %s481 = sshll.u32 %s474, 4
          %s482 = int_to_ptr.vmem [resolvable:$true] %s481
          %487 = dma.hbm_to_vmem [thread:$0]  %s480, 256, %s482, %s471, 128, 128, 8
        $region52: #{tpu_custom_call.1} parent=35 // pred_fallthru
          _
      $region36: #{tpu_custom_call.1} parent=5 // pred_fallthru
        _
      %p488 = scmp.le.s32.totalorder 1, %s38
      %p489 = scmp.lt.s32.totalorder %s38, 9
      %p490 = pnand %p488, %p489
      %p491 = pneg %p490
      // Predicated region
      $region53: #{tpu_custom_call.1} parent=5 // pred_check
        _
      $region54: #{tpu_custom_call.1} parent=5 // pred_check_branch
        %493 = sbr.rel (%p490) target = $region56
      $region55: #{tpu_custom_call.1} parent=5 // pred_region
        %s494 = ssub.s32 %s38, 1
        %s495 = sand.u32 %s79, 1
        %s496 = scalar_lea.sflag [#allocation8], %s495
        %s497 = sand.u32 %s79, 1
        %s498 = smul.addr %s497, 128
        %s499 = scalar_lea.vmem [#allocation7], %s498
        // Predicated region
        $region57: #{tpu_custom_call.1} parent=55 // pred_check
          %p500 = pneg %p92
        $region58: #{tpu_custom_call.1} parent=55 // pred_check_branch
          %502 = sbr.rel (%p500) target = $region60
        $region59: #{tpu_custom_call.1} parent=55 // pred_region
          %503 = dma.done %s496, 2048
        $region60: #{tpu_custom_call.1} parent=55 // pred_fallthru
          _
        %s504 = sand.u32 %s43, 1
        %s505 = scalar_lea.sflag [#allocation11], %s504
        %s506 = sand.u32 %s121, 1
        %s507 = smul.addr %s506, 128
        %s508 = scalar_lea.vmem [#allocation10], %s507
        // Predicated region
        $region61: #{tpu_custom_call.1} parent=55 // pred_check
          %p509 = pneg %p134
        $region62: #{tpu_custom_call.1} parent=55 // pred_check_branch
          %511 = sbr.rel (%p509) target = $region64
        $region63: #{tpu_custom_call.1} parent=55 // pred_region
          %512 = dma.done %s505, 2048
        $region64: #{tpu_custom_call.1} parent=55 // pred_fallthru
          _
        %s513 = sand.u32 %s43, 1
        %s514 = scalar_lea.sflag [#allocation11], %s513
        %s515 = sand.u32 %s189, 1
        %s516 = smul.addr %s515, 16
        %s517 = scalar_lea.vmem [#allocation12], %s516
        // Predicated region
        $region65: #{tpu_custom_call.1} parent=55 // pred_check
          %p518 = pneg %p202
        $region66: #{tpu_custom_call.1} parent=55 // pred_check_branch
          %520 = sbr.rel (%p518) target = $region68
        $region67: #{tpu_custom_call.1} parent=55 // pred_region
          %521 = dma.done %s514, 256
        $region68: #{tpu_custom_call.1} parent=55 // pred_fallthru
          _
        // Predicated region
        $region69: #{tpu_custom_call.1} parent=55 // pred_check
          %p522 = pneg %p244
        $region70: #{tpu_custom_call.1} parent=55 // pred_check_branch
          %524 = sbr.rel (%p522) target = $region72
        $region71: #{tpu_custom_call.1} parent=55 // pred_region
          %525 = dma.done [#allocation14], 2048
        $region72: #{tpu_custom_call.1} parent=55 // pred_fallthru
          _
        // Predicated region
        $region73: #{tpu_custom_call.1} parent=55 // pred_check
          %p526 = pneg %p286
        $region74: #{tpu_custom_call.1} parent=55 // pred_check_branch
          %528 = sbr.rel (%p526) target = $region76
        $region75: #{tpu_custom_call.1} parent=55 // pred_region
          %529 = dma.done [#allocation14], 2048
        $region76: #{tpu_custom_call.1} parent=55 // pred_fallthru
          _
        %s530 = sand.u32 %s79, 1
        %s531 = scalar_lea.sflag [#allocation8], %s530
        %s532 = sand.u32 %s79, 1
        %s533 = smul.addr %s532, 128
        %s534 = scalar_lea.vmem [#allocation7], %s533
        %p535 = pneg %p92
        %p536 = pneg %p89
        %s537 = sand.u32 %s43, 1
        %s538 = scalar_lea.sflag [#allocation11], %s537
        %s539 = sand.u32 %s121, 1
        %s540 = smul.addr %s539, 128
        %s541 = scalar_lea.vmem [#allocation10], %s540
        %p542 = pneg %p134
        %p543 = pneg %p131
        %s544 = sld [smem:[#allocation4 + %s47]]
        %s545 = sld [smem:[#allocation5 + %s47]]
        %s546 = ssub.s32 %s545, 1
        %p547 = scmp.gt.s32.totalorder %s546, 0
        %s548 = scalar_select %p547, %s546, 0
        %p549 = scmp.lt.s32.totalorder %s48, %s548
        %s550 = scalar_select %p549, %s48, %s548
        %s551 = sadd.s32 %s544, %s550
        %p552 = scmp.lt.s32.totalorder %s551, 4
        %s553 = scalar_select %p552, %s551, 4
        %s554 = scalar_lea.vmem %s4, %s553
        %p555 = pneg %p176
        %p556 = pneg %p173
        %s557 = sand.u32 %s43, 1
        %s558 = scalar_lea.sflag [#allocation11], %s557
        %s559 = sand.u32 %s189, 1
        %s560 = smul.addr %s559, 16
        %s561 = scalar_lea.vmem [#allocation12], %s560
        %p562 = pneg %p202
        %p563 = pneg %p199
        %p564 = pneg %p223
        %p565 = pneg %p220
        %p566 = pneg %p244
        %p567 = pneg %p241
        %p568 = pneg %p265
        %p569 = pneg %p262
        %p570 = pneg %p286
        %p571 = pneg %p283
        %p572 = pneg %p307
        %p573 = pneg %p304
        %p574 = pneg %p333
        %p575 = pneg %p330
        %s576 = sand.u32 %s320, 1
        %s577 = scalar_lea.sflag [#allocation9], %s576
        %s578 = sand.u32 %s320, 1
        %s579 = smul.addr %s578, 16
        %s580 = scalar_lea.vmem [#allocation16], %s579
        %s581 = sld [smem:[#allocation4 + %s47]]
        %s582 = sld [smem:[#allocation5 + %s47]]
        %s583 = ssub.s32 %s582, 1
        %p584 = scmp.gt.s32.totalorder %s583, 0
        %s585 = scalar_select %p584, %s583, 0
        %p586 = scmp.lt.s32.totalorder %s48, %s585
        %s587 = scalar_select %p586, %s48, %s585
        %s588 = sadd.s32 %s581, %s587
        %s589 = smul.u32 16, %s588
        %s590 = sld [smem:[#allocation4 + %s47]]
        %s591 = sld [smem:[#allocation5 + %s47]]
        %s592 = ssub.s32 %s591, 1
        %p593 = scmp.gt.s32.totalorder %s592, 0
        %s594 = scalar_select %p593, %s592, 0
        %p595 = scmp.lt.s32.totalorder %s48, %s594
        %s596 = scalar_select %p595, %s48, %s594
        %s597 = sadd.s32 %s590, %s596
        %s598 = smul.u32 16, %s597
        %s599 = sld [smem:[#allocation4 + %s47]]
        %s600 = sld [smem:[#allocation5 + %s47]]
        %s601 = ssub.s32 %s600, 1
        %p602 = scmp.gt.s32.totalorder %s601, 0
        %s603 = scalar_select %p602, %s601, 0
        %p604 = scmp.lt.s32.totalorder %s48, %s603
        %s605 = scalar_select %p604, %s48, %s603
        %s606 = sadd.s32 %s599, %s605
        %p607 = scmp.lt.s32.totalorder %s606, 4
        %s608 = scalar_select %p607, %s606, 4
        %s609 = scalar_lea.vmem %s4, %s608
        %s610 = sld [smem:[#allocation4 + %s47]]
        %s611 = sld [smem:[#allocation5 + %s47]]
        %s612 = ssub.s32 %s611, 1
        %p613 = scmp.gt.s32.totalorder %s612, 0
        %s614 = scalar_select %p613, %s612, 0
        %p615 = scmp.lt.s32.totalorder %s48, %s614
        %s616 = scalar_select %p615, %s48, %s614
        %s617 = sadd.s32 %s610, %s616
        %s618 = smul.u32 2, %s47
        %s619 = smul.u32 2, %s47
        %p620 = scmp.eq.s32.totalorder %s48, 0
        // Predicated region
        $region77: #{tpu_custom_call.1} parent=55 // pred_check
          %p621 = pneg %p620
        $region78: #{tpu_custom_call.1} parent=55 // pred_check_branch
          %623 = sbr.rel (%p621) target = $region80
        $region79: #{tpu_custom_call.1} parent=55 // pred_region
          %624 = vst [vmem:[#allocation2] sm:$0xff] 0.0
          %625 = vst [vmem:[#allocation2 + $0x8] sm:$0xff] 0.0
        $region80: #{tpu_custom_call.1} parent=55 // pred_fallthru
          _
        %s626 = sld [smem:[#allocation5 + %s47]]
        %p627 = scmp.lt.s32.totalorder %s48, %s626
        // Predicated region
        $region81: #{tpu_custom_call.1} parent=55 // pred_check
          %p628 = pneg %p627
        $region82: #{tpu_custom_call.1} parent=55 // pred_check_branch
          %630 = sbr.rel (%p628) target = $region84
        $region83: #{tpu_custom_call.1} parent=55 // pred_region
          %v631 = vld [vmem:[%s499] sm:$0xff]
          %v632 = vld [vmem:[%s499 + $0x8] sm:$0xff]
          %v633 = vld [vmem:[%s499 + $0x10] sm:$0xff]
          %v634 = vld [vmem:[%s499 + $0x18] sm:$0xff]
          %v635 = vld [vmem:[%s499 + $0x20] sm:$0xff]
          %v636 = vld [vmem:[%s499 + $0x28] sm:$0xff]
          %v637 = vld [vmem:[%s499 + $0x30] sm:$0xff]
          %v638 = vld [vmem:[%s499 + $0x38] sm:$0xff]
          %v639 = vld [vmem:[%s499 + $0x40] sm:$0xff]
          %v640 = vld [vmem:[%s499 + $0x48] sm:$0xff]
          %v641 = vld [vmem:[%s499 + $0x50] sm:$0xff]
          %v642 = vld [vmem:[%s499 + $0x58] sm:$0xff]
          %v643 = vld [vmem:[%s499 + $0x60] sm:$0xff]
          %v644 = vld [vmem:[%s499 + $0x68] sm:$0xff]
          %v645 = vld [vmem:[%s499 + $0x70] sm:$0xff]
          %v646 = vld [vmem:[%s499 + $0x78] sm:$0xff]
          %v647 = vld [vmem:[%s508] sm:$0xff]
          %v648 = vld [vmem:[%s508 + $0x8] sm:$0xff]
          %v649 = vld [vmem:[%s508 + $0x10] sm:$0xff]
          %v650 = vld [vmem:[%s508 + $0x18] sm:$0xff]
          %v651 = vld [vmem:[%s508 + $0x20] sm:$0xff]
          %v652 = vld [vmem:[%s508 + $0x28] sm:$0xff]
          %v653 = vld [vmem:[%s508 + $0x30] sm:$0xff]
          %v654 = vld [vmem:[%s508 + $0x38] sm:$0xff]
          %v655 = vld [vmem:[%s508 + $0x40] sm:$0xff]
          %v656 = vld [vmem:[%s508 + $0x48] sm:$0xff]
          %v657 = vld [vmem:[%s508 + $0x50] sm:$0xff]
          %v658 = vld [vmem:[%s508 + $0x58] sm:$0xff]
          %v659 = vld [vmem:[%s508 + $0x60] sm:$0xff]
          %v660 = vld [vmem:[%s508 + $0x68] sm:$0xff]
          %v661 = vld [vmem:[%s508 + $0x70] sm:$0xff]
          %v662 = vld [vmem:[%s508 + $0x78] sm:$0xff]
          %v663 = vadd.f32 %v631, %v647
          %v664 = vadd.f32 %v632, %v648
          %v665 = vadd.f32 %v633, %v649
          %v666 = vadd.f32 %v634, %v650
          %v667 = vadd.f32 %v635, %v651
          %v668 = vadd.f32 %v636, %v652
          %v669 = vadd.f32 %v637, %v653
          %v670 = vadd.f32 %v638, %v654
          %v671 = vadd.f32 %v639, %v655
          %v672 = vadd.f32 %v640, %v656
          %v673 = vadd.f32 %v641, %v657
          %v674 = vadd.f32 %v642, %v658
          %v675 = vadd.f32 %v643, %v659
          %v676 = vadd.f32 %v644, %v660
          %v677 = vadd.f32 %v645, %v661
          %v678 = vadd.f32 %v646, %v662
          %v679 = vmax.f32 %v663, 0.0
          %v680 = vmax.f32 %v664, 0.0
          %v681 = vmax.f32 %v665, 0.0
          %v682 = vmax.f32 %v666, 0.0
          %v683 = vmax.f32 %v667, 0.0
          %v684 = vmax.f32 %v668, 0.0
          %v685 = vmax.f32 %v669, 0.0
          %v686 = vmax.f32 %v670, 0.0
          %v687 = vmax.f32 %v671, 0.0
          %v688 = vmax.f32 %v672, 0.0
          %v689 = vmax.f32 %v673, 0.0
          %v690 = vmax.f32 %v674, 0.0
          %v691 = vmax.f32 %v675, 0.0
          %v692 = vmax.f32 %v676, 0.0
          %v693 = vmax.f32 %v677, 0.0
          %v694 = vmax.f32 %v678, 0.0
          %v695 = vlaneseq
          %v696 = vshrl.u32 %v695, 7
          %v697 = vadd.s32 %v696, 8
          %s698 = smul.u32 %s47, 16
          %v699 = vstv %s698
          %v700 = vadd.s32 %v696, %v699
          %v701 = vadd.s32 %v697, %v699
          %v702 = vld [vmem:[%s609] sm:$0x1]
          %v703 = vlaneseq
          %v704 = vshrl.u32 %v703, 7
          %v705 = vsub.s32 0, %v704
          %v706 = vrot.slane %v702, %v705
          %vm707 = vcmp.eq.s32.totalorder %v700, %v706
          %vm708 = vcmp.eq.s32.totalorder %v701, %v706
          %v709 = vsel %vm707, 1, 0
          %v710 = vsel %vm708, 1, 0
          %v711 = vcvt.s32.f32 %v709
          %v712 = vcvt.s32.f32 %v710
          %v713 = vld [vmem:[#allocation2] sm:$0xff]
          %v714 = vld [vmem:[#allocation2 + $0x8] sm:$0xff]
          %715 = vmatprep.subr.mxu0 0.0
          %716 = vmatpush1.msra.mxu0 %v679
          %717 = vmatprep.subr.mxu0 0.0
          %718 = vmatpush1.msra.mxu0 %v680
          %719 = vmatprep.subr.mxu0 0.0
          %720 = vmatpush1.msra.mxu0 %v681
          %721 = vmatprep.subr.mxu0 0.0
          %722 = vmatpush1.msra.mxu0 %v682
          %723 = vmatprep.subr.mxu0 0.0
          %724 = vmatpush1.msra.mxu0 %v683
          %725 = vmatprep.subr.mxu0 0.0
          %726 = vmatpush1.msra.mxu0 %v684
          %727 = vmatprep.subr.mxu0 0.0
          %728 = vmatpush1.msra.mxu0 %v685
          %729 = vmatprep.subr.mxu0 0.0
          %730 = vmatpush1.msra.mxu0 %v686
          %731 = vmatprep.subr.mxu0 0.0
          %732 = vmatpush1.msra.mxu0 %v687
          %733 = vmatprep.subr.mxu0 0.0
          %734 = vmatpush1.msra.mxu0 %v688
          %735 = vmatprep.subr.mxu0 0.0
          %736 = vmatpush1.msra.mxu0 %v689
          %737 = vmatprep.subr.mxu0 0.0
          %738 = vmatpush1.msra.mxu0 %v690
          %739 = vmatprep.subr.mxu0 0.0
          %740 = vmatpush1.msra.mxu0 %v691
          %741 = vmatprep.subr.mxu0 0.0
          %742 = vmatpush1.msra.mxu0 %v692
          %743 = vmatprep.subr.mxu0 0.0
          %744 = vmatpush1.msra.mxu0 %v693
          %745 = vmatprep.subr.mxu0 0.0
          %746 = vmatpush1.msra.mxu0 %v694
          %747 = vmatprep.subr.mxu0 0.0
          %748 = vmatpush1.msra.mxu0 0.0
          %749 = vmatprep.subr.mxu0 0.0
          %750 = vmatpush1.msra.mxu0 0.0
          %751 = vmatprep.subr.mxu0 0.0
          %752 = vmatpush1.msra.mxu0 0.0
          %753 = vmatprep.subr.mxu0 0.0
          %754 = vmatpush1.msra.mxu0 0.0
          %755 = vmatprep.subr.mxu0 0.0
          %756 = vmatpush1.msra.mxu0 0.0
          %757 = vmatprep.subr.mxu0 0.0
          %758 = vmatpush1.msra.mxu0 0.0
          %759 = vmatprep.subr.mxu0 0.0
          %760 = vmatpush1.msra.mxu0 0.0
          %761 = vmatprep.subr.mxu0 0.0
          %762 = vmatpush1.msra.mxu0 0.0
          %763 = vmatprep.subr.mxu0 0.0
          %764 = vmatpush1.msra.mxu0 0.0
          %765 = vmatprep.subr.mxu0 0.0
          %766 = vmatpush1.msra.mxu0 0.0
          %767 = vmatprep.subr.mxu0 0.0
          %768 = vmatpush1.msra.mxu0 0.0
          %769 = vmatprep.subr.mxu0 0.0
          %770 = vmatpush1.msra.mxu0 0.0
          %771 = vmatprep.subr.mxu0 0.0
          %772 = vmatpush1.msra.mxu0 0.0
          %773 = vmatprep.subr.mxu0 0.0
          %774 = vmatpush1.msra.mxu0 0.0
          %775 = vmatprep.subr.mxu0 0.0
          %776 = vmatpush1.msra.mxu0 0.0
          %777 = vmatprep.subr.mxu0 0.0
          %778 = vmatpush1.msra.mxu0 0.0
          %779 = vmatprep.mubr.f32.mxu0 0.0
          %780 = vmatmul.mubr.f32.gmra.mrb[0].mxu0 %v711
          %v781 = vpop.f32.mrb[0].mxu0
          %v782 = vadd.f32 0.0, %v781
          %v783 = vpop.f32.mrb[0].mxu0
          %784 = vmatprep.mubr.f32.mxu0 0.0
          %785 = vmatmul.mubr.f32.gmra.mrb[0].mxu0 %v712
          %v786 = vpop.f32.mrb[0].mxu0
          %v787 = vadd.f32 0.0, %v786
          %v788 = vpop.f32.mrb[0].mxu0
          %789 = vdwg.mxu0
          %v790 = vadd.f32 %v713, %v782
          %v791 = vadd.f32 %v714, %v787
          %792 = vst [vmem:[#allocation2] sm:$0xff] %v790
          %793 = vst [vmem:[#allocation2 + $0x8] sm:$0xff] %v791
        $region84: #{tpu_custom_call.1} parent=55 // pred_fallthru
          _
        %p794 = scmp.eq.s32.totalorder %s48, 1
        // Predicated region
        $region85: #{tpu_custom_call.1} parent=55 // pred_check
          %p795 = pneg %p794
        $region86: #{tpu_custom_call.1} parent=55 // pred_check_branch
          %797 = sbr.rel (%p795) target = $region88
        $region87: #{tpu_custom_call.1} parent=55 // pred_region
          %s798 = sld [smem:[#allocation6]]
          %s799 = sadd.f32 %s798, 1.0
          %v800 = vld [vmem:[%s517] sm:$0xff]
          %v801 = vld [vmem:[%s517 + $0x8] sm:$0xff]
          %v802 = vstv %s799
          %v803 = vmul.f32 %v802, %v800
          %v804 = vmul.f32 %v802, %v801
          %v805 = vld [vmem:[#allocation2] sm:$0xff]
          %v806 = vld [vmem:[#allocation2 + $0x8] sm:$0xff]
          %v807 = vadd.f32 %v803, %v805
          %v808 = vadd.f32 %v804, %v806
          %v809 = vld [vmem:[#allocation13] sm:$0xff]
          %v810 = vld [vmem:[#allocation13 + $0x8] sm:$0xff]
          %v811 = vld [vmem:[#allocation13 + $0x10] sm:$0xff]
          %v812 = vld [vmem:[#allocation13 + $0x18] sm:$0xff]
          %v813 = vld [vmem:[#allocation13 + $0x20] sm:$0xff]
          %v814 = vld [vmem:[#allocation13 + $0x28] sm:$0xff]
          %v815 = vld [vmem:[#allocation13 + $0x30] sm:$0xff]
          %v816 = vld [vmem:[#allocation13 + $0x38] sm:$0xff]
          %v817 = vld [vmem:[#allocation13 + $0x40] sm:$0xff]
          %v818 = vld [vmem:[#allocation13 + $0x48] sm:$0xff]
          %v819 = vld [vmem:[#allocation13 + $0x50] sm:$0xff]
          %v820 = vld [vmem:[#allocation13 + $0x58] sm:$0xff]
          %v821 = vld [vmem:[#allocation13 + $0x60] sm:$0xff]
          %v822 = vld [vmem:[#allocation13 + $0x68] sm:$0xff]
          %v823 = vld [vmem:[#allocation13 + $0x70] sm:$0xff]
          %v824 = vld [vmem:[#allocation13 + $0x78] sm:$0xff]
          %v825 = vld [vmem:[%s8] sm:$0x1]
          %v827 = vlaneseq
          %v828 = vshrl.u32 %v827, 7
          %v829 = vsub.s32 0, %v828
          %v830 = vrot.slane %v825, %v829
          %832 = vmatprep.subr.mxu0 0.0
          %833 = vmatpush1.msra.mxu0 %v809
          %834 = vmatprep.subr.mxu0 0.0
          %835 = vmatpush1.msra.mxu0 %v810
          %836 = vmatprep.subr.mxu0 0.0
          %837 = vmatpush1.msra.mxu0 %v811
          %838 = vmatprep.subr.mxu0 0.0
          %839 = vmatpush1.msra.mxu0 %v812
          %840 = vmatprep.subr.mxu0 0.0
          %841 = vmatpush1.msra.mxu0 %v813
          %842 = vmatprep.subr.mxu0 0.0
          %843 = vmatpush1.msra.mxu0 %v814
          %844 = vmatprep.subr.mxu0 0.0
          %845 = vmatpush1.msra.mxu0 %v815
          %846 = vmatprep.subr.mxu0 0.0
          %847 = vmatpush1.msra.mxu0 %v816
          %848 = vmatprep.subr.mxu0 0.0
          %849 = vmatpush1.msra.mxu0 %v817
          %850 = vmatprep.subr.mxu0 0.0
          %851 = vmatpush1.msra.mxu0 %v818
          %852 = vmatprep.subr.mxu0 0.0
          %853 = vmatpush1.msra.mxu0 %v819
          %854 = vmatprep.subr.mxu0 0.0
          %855 = vmatpush1.msra.mxu0 %v820
          %856 = vmatprep.subr.mxu0 0.0
          %857 = vmatpush1.msra.mxu0 %v821
          %858 = vmatprep.subr.mxu0 0.0
          %859 = vmatpush1.msra.mxu0 %v822
          %860 = vmatprep.subr.mxu0 0.0
          %861 = vmatpush1.msra.mxu0 %v823
          %862 = vmatprep.subr.mxu0 0.0
          %863 = vmatpush1.msra.mxu0 %v824
          %864 = vmatprep.subr.mxu0 0.0
          %865 = vmatpush1.msra.mxu0 0.0
          %866 = vmatprep.subr.mxu0 0.0
          %867 = vmatpush1.msra.mxu0 0.0
          %868 = vmatprep.subr.mxu0 0.0
          %869 = vmatpush1.msra.mxu0 0.0
          %870 = vmatprep.subr.mxu0 0.0
          %871 = vmatpush1.msra.mxu0 0.0
          %872 = vmatprep.subr.mxu0 0.0
          %873 = vmatpush1.msra.mxu0 0.0
          %874 = vmatprep.subr.mxu0 0.0
          %875 = vmatpush1.msra.mxu0 0.0
          %876 = vmatprep.subr.mxu0 0.0
          %877 = vmatpush1.msra.mxu0 0.0
          %878 = vmatprep.subr.mxu0 0.0
          %879 = vmatpush1.msra.mxu0 0.0
          %880 = vmatprep.subr.mxu0 0.0
          %881 = vmatpush1.msra.mxu0 0.0
          %882 = vmatprep.subr.mxu0 0.0
          %883 = vmatpush1.msra.mxu0 0.0
          %884 = vmatprep.subr.mxu0 0.0
          %885 = vmatpush1.msra.mxu0 0.0
          %886 = vmatprep.subr.mxu0 0.0
          %887 = vmatpush1.msra.mxu0 0.0
          %888 = vmatprep.subr.mxu0 0.0
          %889 = vmatpush1.msra.mxu0 0.0
          %890 = vmatprep.subr.mxu0 0.0
          %891 = vmatpush1.msra.mxu0 0.0
          %892 = vmatprep.subr.mxu0 0.0
          %893 = vmatpush1.msra.mxu0 0.0
          %894 = vmatprep.subr.mxu0 0.0
          %895 = vmatpush1.msra.mxu0 0.0
          %896 = vmatprep.mubr.f32.mxu0 0.0
          %897 = vmatmul.mubr.f32.gmra.mrb[0].mxu0 %v807
          %v898 = vpop.f32.mrb[0].mxu0
          %v899 = vadd.f32 %v830, %v898
          %v900 = vpop.f32.mrb[0].mxu0
          %901 = vmatprep.mubr.f32.mxu0 0.0
          %902 = vmatmul.mubr.f32.gmra.mrb[0].mxu0 %v808
          %v903 = vpop.f32.mrb[0].mxu0
          %v904 = vadd.f32 %v830, %v903
          %v905 = vpop.f32.mrb[0].mxu0
          %906 = vdwg.mxu0
          %v907 = vmax.f32 %v899, 0.0
          %v908 = vmax.f32 %v904, 0.0
          %v909 = vld [vmem:[#allocation15] sm:$0xff]
          %v910 = vld [vmem:[#allocation15 + $0x8] sm:$0xff]
          %v911 = vld [vmem:[#allocation15 + $0x10] sm:$0xff]
          %v912 = vld [vmem:[#allocation15 + $0x18] sm:$0xff]
          %v913 = vld [vmem:[#allocation15 + $0x20] sm:$0xff]
          %v914 = vld [vmem:[#allocation15 + $0x28] sm:$0xff]
          %v915 = vld [vmem:[#allocation15 + $0x30] sm:$0xff]
          %v916 = vld [vmem:[#allocation15 + $0x38] sm:$0xff]
          %v917 = vld [vmem:[#allocation15 + $0x40] sm:$0xff]
          %v918 = vld [vmem:[#allocation15 + $0x48] sm:$0xff]
          %v919 = vld [vmem:[#allocation15 + $0x50] sm:$0xff]
          %v920 = vld [vmem:[#allocation15 + $0x58] sm:$0xff]
          %v921 = vld [vmem:[#allocation15 + $0x60] sm:$0xff]
          %v922 = vld [vmem:[#allocation15 + $0x68] sm:$0xff]
          %v923 = vld [vmem:[#allocation15 + $0x70] sm:$0xff]
          %v924 = vld [vmem:[#allocation15 + $0x78] sm:$0xff]
          %v925 = vld [vmem:[%s10] sm:$0x1]
          %v927 = vlaneseq
          %v928 = vshrl.u32 %v927, 7
          %v929 = vsub.s32 0, %v928
          %v930 = vrot.slane %v925, %v929
          %932 = vmatprep.subr.mxu0 0.0
          %933 = vmatpush1.msra.mxu0 %v909
          %934 = vmatprep.subr.mxu0 0.0
          %935 = vmatpush1.msra.mxu0 %v910
          %936 = vmatprep.subr.mxu0 0.0
          %937 = vmatpush1.msra.mxu0 %v911
          %938 = vmatprep.subr.mxu0 0.0
          %939 = vmatpush1.msra.mxu0 %v912
          %940 = vmatprep.subr.mxu0 0.0
          %941 = vmatpush1.msra.mxu0 %v913
          %942 = vmatprep.subr.mxu0 0.0
          %943 = vmatpush1.msra.mxu0 %v914
          %944 = vmatprep.subr.mxu0 0.0
          %945 = vmatpush1.msra.mxu0 %v915
          %946 = vmatprep.subr.mxu0 0.0
          %947 = vmatpush1.msra.mxu0 %v916
          %948 = vmatprep.subr.mxu0 0.0
          %949 = vmatpush1.msra.mxu0 %v917
          %950 = vmatprep.subr.mxu0 0.0
          %951 = vmatpush1.msra.mxu0 %v918
          %952 = vmatprep.subr.mxu0 0.0
          %953 = vmatpush1.msra.mxu0 %v919
          %954 = vmatprep.subr.mxu0 0.0
          %955 = vmatpush1.msra.mxu0 %v920
          %956 = vmatprep.subr.mxu0 0.0
          %957 = vmatpush1.msra.mxu0 %v921
          %958 = vmatprep.subr.mxu0 0.0
          %959 = vmatpush1.msra.mxu0 %v922
          %960 = vmatprep.subr.mxu0 0.0
          %961 = vmatpush1.msra.mxu0 %v923
          %962 = vmatprep.subr.mxu0 0.0
          %963 = vmatpush1.msra.mxu0 %v924
          %964 = vmatprep.subr.mxu0 0.0
          %965 = vmatpush1.msra.mxu0 0.0
          %966 = vmatprep.subr.mxu0 0.0
          %967 = vmatpush1.msra.mxu0 0.0
          %968 = vmatprep.subr.mxu0 0.0
          %969 = vmatpush1.msra.mxu0 0.0
          %970 = vmatprep.subr.mxu0 0.0
          %971 = vmatpush1.msra.mxu0 0.0
          %972 = vmatprep.subr.mxu0 0.0
          %973 = vmatpush1.msra.mxu0 0.0
          %974 = vmatprep.subr.mxu0 0.0
          %975 = vmatpush1.msra.mxu0 0.0
          %976 = vmatprep.subr.mxu0 0.0
          %977 = vmatpush1.msra.mxu0 0.0
          %978 = vmatprep.subr.mxu0 0.0
          %979 = vmatpush1.msra.mxu0 0.0
          %980 = vmatprep.subr.mxu0 0.0
          %981 = vmatpush1.msra.mxu0 0.0
          %982 = vmatprep.subr.mxu0 0.0
          %983 = vmatpush1.msra.mxu0 0.0
          %984 = vmatprep.subr.mxu0 0.0
          %985 = vmatpush1.msra.mxu0 0.0
          %986 = vmatprep.subr.mxu0 0.0
          %987 = vmatpush1.msra.mxu0 0.0
          %988 = vmatprep.subr.mxu0 0.0
          %989 = vmatpush1.msra.mxu0 0.0
          %990 = vmatprep.subr.mxu0 0.0
          %991 = vmatpush1.msra.mxu0 0.0
          %992 = vmatprep.subr.mxu0 0.0
          %993 = vmatpush1.msra.mxu0 0.0
          %994 = vmatprep.subr.mxu0 0.0
          %995 = vmatpush1.msra.mxu0 0.0
          %996 = vmatprep.mubr.f32.mxu0 0.0
          %997 = vmatmul.mubr.f32.gmra.mrb[0].mxu0 %v907
          %v998 = vpop.f32.mrb[0].mxu0
          %v999 = vadd.f32 %v930, %v998
          %v1000 = vpop.f32.mrb[0].mxu0
          %1001 = vmatprep.mubr.f32.mxu0 0.0
          %1002 = vmatmul.mubr.f32.gmra.mrb[0].mxu0 %v908
          %v1003 = vpop.f32.mrb[0].mxu0
          %v1004 = vadd.f32 %v930, %v1003
          %v1005 = vpop.f32.mrb[0].mxu0
          %1006 = vdwg.mxu0
          %1007 = vst [vmem:[%s580] sm:$0xff] %v999
          %1008 = vst [vmem:[%s580 + $0x8] sm:$0xff] %v1004
        $region88: #{tpu_custom_call.1} parent=55 // pred_fallthru
          _
        %s1009 = sand.u32 %s320, 1
        %s1010 = scalar_lea.sflag [#allocation9], %s1009
        %s1011 = sand.u32 %s320, 1
        %s1012 = smul.addr %s1011, 16
        %s1013 = scalar_lea.vmem [#allocation16], %s1012
        // Predicated region
        $region89: #{tpu_custom_call.1} parent=55 // pred_check
          %p1014 = pneg %p330
        $region90: #{tpu_custom_call.1} parent=55 // pred_check_branch
          %1016 = sbr.rel (%p1014) target = $region92
        $region91: #{tpu_custom_call.1} parent=55 // pred_region
          %s1017 = smul.u32 2, %s47
          %s1019 = ssub.s32 256, 256
          %1020 = vsyncadd %s1010, %s1019
          %s1021 = smul.addr %s1017, 128
          %s1022 = scalar_lea.hbm %s11, %s1021
          %s1023 = sshll.u32 %s1013, 4
          %s1024 = int_to_ptr.vmem [resolvable:$true] %s1023
          %1029 = dma.vmem_to_hbm [thread:$0]  %s1024, 256, %s1022, %s1010, 128, 128, 8
        $region92: #{tpu_custom_call.1} parent=55 // pred_fallthru
          _
      $region56: #{tpu_custom_call.1} parent=5 // pred_fallthru
        _
      %p1030 = scmp.le.s32.totalorder 2, %s38
      // Predicated region
      $region93: #{tpu_custom_call.1} parent=5 // pred_check
        %p1031 = pneg %p1030
      $region94: #{tpu_custom_call.1} parent=5 // pred_check_branch
        %1033 = sbr.rel (%p1031) target = $region96
      $region95: #{tpu_custom_call.1} parent=5 // pred_region
        %s1034 = ssub.s32 %s38, 2
        // Predicated region
        $region97: #{tpu_custom_call.1} parent=95 // pred_check
          %p1035 = pneg %p336
        $region98: #{tpu_custom_call.1} parent=95 // pred_check_branch
          %1037 = sbr.rel (%p1035) target = $region100
        $region99: #{tpu_custom_call.1} parent=95 // pred_region
          %s1038 = sand.u32 %s321, 1
          %s1039 = scalar_lea.sflag [#allocation9], %s1038
          %s1040 = sand.u32 %s321, 1
          %s1041 = smul.addr %s1040, 16
          %s1042 = scalar_lea.vmem [#allocation16], %s1041
          %1043 = dma.done %s1039, 256
        $region100: #{tpu_custom_call.1} parent=95 // pred_fallthru
          _
      $region96: #{tpu_custom_call.1} parent=5 // pred_fallthru
        _
    $region6: #{tpu_custom_call.1} parent=1 // loop_footer
      %s42 = sadd.s32 1, %s38
    $region7: #{tpu_custom_call.1} parent=1 // loop_footer_branch
      %37 = sbr.rel target = $region3
    $region8: #{tpu_custom_call.1} parent=1 // loop_exit
      _
    %1044 = vsyncpa [#allocation8], 1
    %s1045 = scalar_lea.sflag [#allocation8], 1
    %1046 = vsyncpa %s1045, 1
    %1047 = vsyncpa [#allocation11], 1
    %s1048 = scalar_lea.sflag [#allocation11], 1
    %1049 = vsyncpa %s1048, 1
    %1050 = vsyncpa [#allocation14], 1
    %1051 = vsyncpa [#allocation9], 1
    %s1052 = scalar_lea.sflag [#allocation9], 1
    %1053 = vsyncpa %s1052, 1

</llo_original>
